<compile_context>
chip_gen: v7x
topology: tpu7x:2x2x1
jax: 0.10.0
libtpu: 0.0.40
codegen_flags: <defaults>
</compile_context>

<pallas_src>
import jax
import jax.numpy as jnp
from jax.experimental import pallas as pl
from jax.experimental.pallas import tpu as pltpu  # noqa: F401  (imported for completeness)


# ----------------------------- fused kernel ---------------------------------
def make_textcnn_kernel(B, T, D, C, kernel_sizes):
    def kernel(x_ref, *refs):
        # x_ref:   (B*T, D) flattened input; row b*T + t == hidden_states[b, t]
        # refs:    [w_0, b_0, w_1, b_1, ...]; w_i: (K_i, D, C), b_i: (1, C)
        # out_ref: (B, len(kernel_sizes) * C)
        out_ref = refs[-1]
        x2d = x_ref[...].astype(jnp.float32)                       # (B*T, D)

        for i, K in enumerate(kernel_sizes):
            w = refs[2 * i][...].astype(jnp.float32)               # (K, D, C)
            bias = refs[2 * i + 1][...].astype(jnp.float32)        # (1, C)
            L = T - K + 1                                          # valid conv length

            # Hoisted input projections: one MXU call per tap over ALL rows.
            proj = [jnp.dot(x2d, w[k], preferred_element_type=jnp.float32)
                    for k in range(K)]                             # K x (B*T, C)

            for b in range(B):
                # conv[b, t, :] = sum_k proj[k][b*T + t + k, :]
                acc = proj[0][b * T: b * T + L, :]
                for k in range(1, K):
                    acc = acc + proj[k][b * T + k: b * T + k + L, :]
                act = jnp.maximum(acc + bias, 0.0)                 # ReLU(conv), (L, C)
                pooled = jnp.max(act, axis=0, keepdims=True)       # global max-pool, (1, C)
                out_ref[b:b + 1, i * C:(i + 1) * C] = pooled.astype(out_ref.dtype)

    return kernel


# ----------------------------- wrapper ---------------------------------------
def textcnn_forward(hidden_states, conv_weights, conv_biases, kernel_sizes):
    """hidden_states: (B, T, D); conv_weights[i]: (C, 1, K_i, D) (PyTorch layout);
    conv_biases[i]: (C,).  Returns (B, len(kernel_sizes) * C) float32."""
    B, T, D = hidden_states.shape
    C = conv_weights[0].shape[0]
    n = len(kernel_sizes)

    x2d = hidden_states.reshape(B * T, D).astype(jnp.float32)

    args = [x2d]
    in_specs = [pl.BlockSpec((B * T, D), lambda i: (0, 0))]
    for W, bvec, K in zip(conv_weights, conv_biases, kernel_sizes):
        # PyTorch (C, 1, K, D) -> kernel layout (K, D, C): w[k][d, c] = W[c, 0, k, d]
        wk = jnp.transpose(W[:, 0, :, :], (1, 2, 0)).astype(jnp.float32)
        args.append(wk)
        args.append(bvec.reshape(1, C).astype(jnp.float32))
        in_specs.append(pl.BlockSpec((K, D, C), lambda i: (0, 0, 0)))
        in_specs.append(pl.BlockSpec((1, C), lambda i: (0, 0)))

    return pl.pallas_call(
        make_textcnn_kernel(B, T, D, C, tuple(kernel_sizes)),
        out_shape=jax.ShapeDtypeStruct((B, n * C), jnp.float32),
        grid=(1,),
        in_specs=in_specs,
        out_specs=pl.BlockSpec((B, n * C), lambda i: (0, 0)),
    )(*args)


# ----------------------------- pure-JAX reference ----------------------------
def textcnn_ref(hidden_states, conv_weights, conv_biases, kernel_sizes):
    B, T, D = hidden_states.shape
    outs = []
    for W, bvec, K in zip(conv_weights, conv_biases, kernel_sizes):
        L = T - K + 1
        windows = jnp.stack([hidden_states[:, k:k + L, :] for k in range(K)],
                            axis=2)                                   # (B, L, K, D)
        conv = jnp.einsum('blkd,ckd->blc', windows, W[:, 0, :, :]) + bvec  # (B, L, C)
        outs.append(jnp.max(jax.nn.relu(conv), axis=1))               # (B, C)
    return jnp.concatenate(outs, axis=1)


# ----------------------------- main -------------------------------------------
if __name__ == "__main__":
    B, T = 2, 16
    hidden_size = 32        # D (conv kernel spans the full hidden width)
    kernel_num = 64         # C (output channels per conv)
    kernel_sizes = (2, 3, 4)

    key = jax.random.PRNGKey(0)
    key, xk = jax.random.split(key)
    hidden_states = jax.random.normal(xk, (B, T, hidden_size), dtype=jnp.float32)

    # Deterministic PyTorch-style uniform(-1/sqrt(fan_in), 1/sqrt(fan_in)) init.
    conv_weights, conv_biases = [], []
    for K in kernel_sizes:
        key, wkk, bkk = jax.random.split(key, 3)
        bound = 1.0 / float(K * hidden_size) ** 0.5
        conv_weights.append(jax.random.uniform(
            wkk, (kernel_num, 1, K, hidden_size), jnp.float32, -bound, bound))
        conv_biases.append(jax.random.uniform(
            bkk, (kernel_num,), jnp.float32, -bound, bound))

    out = textcnn_forward(hidden_states, conv_weights, conv_biases, kernel_sizes)
    out = jax.block_until_ready(out)

    ref = textcnn_ref(hidden_states, conv_weights, conv_biases, kernel_sizes)
    assert out.shape == (B, kernel_num * len(kernel_sizes))
    assert jnp.max(jnp.abs(out - ref)) < 1e-3, "mismatch vs pure-JAX reference"
    print("KERNEL_OK")
</pallas_src>

<mosaic_0001>
module attributes {stable_mosaic.version = 11 : i64} {
  func.func @kernel(%arg0: i32, %arg1: memref<32x32xf32, #tpu.memory_space<vmem>>, %arg2: memref<2x32x64xf32, #tpu.memory_space<vmem>>, %arg3: memref<1x64xf32, #tpu.memory_space<vmem>>, %arg4: memref<3x32x64xf32, #tpu.memory_space<vmem>>, %arg5: memref<1x64xf32, #tpu.memory_space<vmem>>, %arg6: memref<4x32x64xf32, #tpu.memory_space<vmem>>, %arg7: memref<1x64xf32, #tpu.memory_space<vmem>>, %arg8: memref<2x192xf32, #tpu.memory_space<vmem>>) attributes {dimension_semantics = [#tpu.dimension_semantics<arbitrary>], iteration_bounds = array<i64: 1>, scalar_prefetch = 0 : i64, scratch_operands = 0 : i64, tpu.core_type = #tpu.core_type<tc>, window_params = [{pipeline_mode = #tpu.pipeline_mode<synchronous>, transform_indices = @transform_0, window_bounds = array<i64: 32, 32>}, {pipeline_mode = #tpu.pipeline_mode<synchronous>, transform_indices = @transform_1, window_bounds = array<i64: 2, 32, 64>}, {pipeline_mode = #tpu.pipeline_mode<synchronous>, transform_indices = @transform_2, window_bounds = array<i64: 1, 64>}, {pipeline_mode = #tpu.pipeline_mode<synchronous>, transform_indices = @transform_3, window_bounds = array<i64: 3, 32, 64>}, {pipeline_mode = #tpu.pipeline_mode<synchronous>, transform_indices = @transform_4, window_bounds = array<i64: 1, 64>}, {pipeline_mode = #tpu.pipeline_mode<synchronous>, transform_indices = @transform_5, window_bounds = array<i64: 4, 32, 64>}, {pipeline_mode = #tpu.pipeline_mode<synchronous>, transform_indices = @transform_6, window_bounds = array<i64: 1, 64>}, {pipeline_mode = #tpu.pipeline_mode<synchronous>, transform_indices = @transform_7, window_bounds = array<i64: 2, 192>}]} {
    %c0 = arith.constant 0 : index
    %c0_0 = arith.constant 0 : index
    %0 = vector.load %arg1[%c0, %c0_0] : memref<32x32xf32, #tpu.memory_space<vmem>>, vector<32x32xf32>
    %c0_1 = arith.constant 0 : index
    %c0_2 = arith.constant 0 : index
    %c0_3 = arith.constant 0 : index
    %1 = vector.load %arg2[%c0_1, %c0_2, %c0_3] : memref<2x32x64xf32, #tpu.memory_space<vmem>>, vector<2x32x64xf32>
    %c0_4 = arith.constant 0 : index
    %c0_5 = arith.constant 0 : index
    %2 = vector.load %arg3[%c0_4, %c0_5] : memref<1x64xf32, #tpu.memory_space<vmem>>, vector<1x64xf32>
    %3 = vector.extract_strided_slice %1 {offsets = [0, 0, 0], sizes = [1, 32, 64], strides = [1, 1, 1]} : vector<2x32x64xf32> to vector<1x32x64xf32>
    %4 = vector.shape_cast %3 : vector<1x32x64xf32> to vector<32x64xf32>
    %cst = arith.constant dense<0.000000e+00> : vector<32x64xf32>
    %5 = tpu.matmul %0, %4, %cst {dimension_numbers = #tpu.dot_dimension_numbers<[1], [0], [0], [1], [0, 0, 1, 1], [], []>} : vector<32x32xf32>, vector<32x64xf32>, vector<32x64xf32> -> vector<32x64xf32>
    %6 = vector.extract_strided_slice %1 {offsets = [1, 0, 0], sizes = [1, 32, 64], strides = [1, 1, 1]} : vector<2x32x64xf32> to vector<1x32x64xf32>
    %7 = vector.shape_cast %6 : vector<1x32x64xf32> to vector<32x64xf32>
    %cst_6 = arith.constant dense<0.000000e+00> : vector<32x64xf32>
    %8 = tpu.matmul %0, %7, %cst_6 {dimension_numbers = #tpu.dot_dimension_numbers<[1], [0], [0], [1], [0, 0, 1, 1], [], []>} : vector<32x32xf32>, vector<32x64xf32>, vector<32x64xf32> -> vector<32x64xf32>
    %9 = vector.extract_strided_slice %5 {offsets = [0, 0], sizes = [15, 64], strides = [1, 1]} : vector<32x64xf32> to vector<15x64xf32>
    %10 = vector.extract_strided_slice %8 {offsets = [1, 0], sizes = [15, 64], strides = [1, 1]} : vector<32x64xf32> to vector<15x64xf32>
    %11 = arith.addf %9, %10 : vector<15x64xf32>
    %12 = vector.broadcast %2 : vector<1x64xf32> to vector<15x64xf32>
    %13 = arith.addf %11, %12 : vector<15x64xf32>
    %cst_7 = arith.constant 0.000000e+00 : f32
    %14 = vector.broadcast %cst_7 : f32 to vector<15x64xf32>
    %15 = arith.maximumf %13, %14 : vector<15x64xf32>
    %cst_8 = arith.constant dense<0xFF800000> : vector<64xf32>
    %16 = vector.multi_reduction <maximumf>, %15, %cst_8 [0] : vector<15x64xf32> to vector<64xf32>
    %17 = vector.shape_cast %16 : vector<64xf32> to vector<1x64xf32>
    %c0_9 = arith.constant 0 : index
    %c0_10 = arith.constant 0 : index
    %18 = vector.load %arg8[%c0_9, %c0_10] : memref<2x192xf32, #tpu.memory_space<vmem>>, vector<1x64xf32>
    tpu.vector_store %arg8[%c0_9, %c0_10], %17 {strides = array<i32>} : memref<2x192xf32, #tpu.memory_space<vmem>>, vector<1x64xf32>,
    %19 = vector.extract_strided_slice %5 {offsets = [16, 0], sizes = [15, 64], strides = [1, 1]} : vector<32x64xf32> to vector<15x64xf32>
    %20 = vector.extract_strided_slice %8 {offsets = [17, 0], sizes = [15, 64], strides = [1, 1]} : vector<32x64xf32> to vector<15x64xf32>
    %21 = arith.addf %19, %20 : vector<15x64xf32>
    %22 = vector.broadcast %2 : vector<1x64xf32> to vector<15x64xf32>
    %23 = arith.addf %21, %22 : vector<15x64xf32>
    %cst_11 = arith.constant 0.000000e+00 : f32
    %24 = vector.broadcast %cst_11 : f32 to vector<15x64xf32>
    %25 = arith.maximumf %23, %24 : vector<15x64xf32>
    %cst_12 = arith.constant dense<0xFF800000> : vector<64xf32>
    %26 = vector.multi_reduction <maximumf>, %25, %cst_12 [0] : vector<15x64xf32> to vector<64xf32>
    %27 = vector.shape_cast %26 : vector<64xf32> to vector<1x64xf32>
    %c1 = arith.constant 1 : index
    %c0_13 = arith.constant 0 : index
    %28 = vector.load %arg8[%c1, %c0_13] : memref<2x192xf32, #tpu.memory_space<vmem>>, vector<1x64xf32>
    tpu.vector_store %arg8[%c1, %c0_13], %27 {strides = array<i32>} : memref<2x192xf32, #tpu.memory_space<vmem>>, vector<1x64xf32>,
    %c0_14 = arith.constant 0 : index
    %c0_15 = arith.constant 0 : index
    %c0_16 = arith.constant 0 : index
    %29 = vector.load %arg4[%c0_14, %c0_15, %c0_16] : memref<3x32x64xf32, #tpu.memory_space<vmem>>, vector<3x32x64xf32>
    %c0_17 = arith.constant 0 : index
    %c0_18 = arith.constant 0 : index
    %30 = vector.load %arg5[%c0_17, %c0_18] : memref<1x64xf32, #tpu.memory_space<vmem>>, vector<1x64xf32>
    %31 = vector.extract_strided_slice %29 {offsets = [0, 0, 0], sizes = [1, 32, 64], strides = [1, 1, 1]} : vector<3x32x64xf32> to vector<1x32x64xf32>
    %32 = vector.shape_cast %31 : vector<1x32x64xf32> to vector<32x64xf32>
    %cst_19 = arith.constant dense<0.000000e+00> : vector<32x64xf32>
    %33 = tpu.matmul %0, %32, %cst_19 {dimension_numbers = #tpu.dot_dimension_numbers<[1], [0], [0], [1], [0, 0, 1, 1], [], []>} : vector<32x32xf32>, vector<32x64xf32>, vector<32x64xf32> -> vector<32x64xf32>
    %34 = vector.extract_strided_slice %29 {offsets = [1, 0, 0], sizes = [1, 32, 64], strides = [1, 1, 1]} : vector<3x32x64xf32> to vector<1x32x64xf32>
    %35 = vector.shape_cast %34 : vector<1x32x64xf32> to vector<32x64xf32>
    %cst_20 = arith.constant dense<0.000000e+00> : vector<32x64xf32>
    %36 = tpu.matmul %0, %35, %cst_20 {dimension_numbers = #tpu.dot_dimension_numbers<[1], [0], [0], [1], [0, 0, 1, 1], [], []>} : vector<32x32xf32>, vector<32x64xf32>, vector<32x64xf32> -> vector<32x64xf32>
    %37 = vector.extract_strided_slice %29 {offsets = [2, 0, 0], sizes = [1, 32, 64], strides = [1, 1, 1]} : vector<3x32x64xf32> to vector<1x32x64xf32>
    %38 = vector.shape_cast %37 : vector<1x32x64xf32> to vector<32x64xf32>
    %cst_21 = arith.constant dense<0.000000e+00> : vector<32x64xf32>
    %39 = tpu.matmul %0, %38, %cst_21 {dimension_numbers = #tpu.dot_dimension_numbers<[1], [0], [0], [1], [0, 0, 1, 1], [], []>} : vector<32x32xf32>, vector<32x64xf32>, vector<32x64xf32> -> vector<32x64xf32>
    %40 = vector.extract_strided_slice %33 {offsets = [0, 0], sizes = [14, 64], strides = [1, 1]} : vector<32x64xf32> to vector<14x64xf32>
    %41 = vector.extract_strided_slice %36 {offsets = [1, 0], sizes = [14, 64], strides = [1, 1]} : vector<32x64xf32> to vector<14x64xf32>
    %42 = arith.addf %40, %41 : vector<14x64xf32>
    %43 = vector.extract_strided_slice %39 {offsets = [2, 0], sizes = [14, 64], strides = [1, 1]} : vector<32x64xf32> to vector<14x64xf32>
    %44 = arith.addf %42, %43 : vector<14x64xf32>
    %45 = vector.broadcast %30 : vector<1x64xf32> to vector<14x64xf32>
    %46 = arith.addf %44, %45 : vector<14x64xf32>
    %cst_22 = arith.constant 0.000000e+00 : f32
    %47 = vector.broadcast %cst_22 : f32 to vector<14x64xf32>
    %48 = arith.maximumf %46, %47 : vector<14x64xf32>
    %cst_23 = arith.constant dense<0xFF800000> : vector<64xf32>
    %49 = vector.multi_reduction <maximumf>, %48, %cst_23 [0] : vector<14x64xf32> to vector<64xf32>
    %50 = vector.shape_cast %49 : vector<64xf32> to vector<1x64xf32>
    %c0_24 = arith.constant 0 : index
    %c64 = arith.constant 64 : index
    %51 = vector.load %arg8[%c0_24, %c64] : memref<2x192xf32, #tpu.memory_space<vmem>>, vector<1x64xf32>
    tpu.vector_store %arg8[%c0_24, %c64], %50 {strides = array<i32>} : memref<2x192xf32, #tpu.memory_space<vmem>>, vector<1x64xf32>,
    %52 = vector.extract_strided_slice %33 {offsets = [16, 0], sizes = [14, 64], strides = [1, 1]} : vector<32x64xf32> to vector<14x64xf32>
    %53 = vector.extract_strided_slice %36 {offsets = [17, 0], sizes = [14, 64], strides = [1, 1]} : vector<32x64xf32> to vector<14x64xf32>
    %54 = arith.addf %52, %53 : vector<14x64xf32>
    %55 = vector.extract_strided_slice %39 {offsets = [18, 0], sizes = [14, 64], strides = [1, 1]} : vector<32x64xf32> to vector<14x64xf32>
    %56 = arith.addf %54, %55 : vector<14x64xf32>
    %57 = vector.broadcast %30 : vector<1x64xf32> to vector<14x64xf32>
    %58 = arith.addf %56, %57 : vector<14x64xf32>
    %cst_25 = arith.constant 0.000000e+00 : f32
    %59 = vector.broadcast %cst_25 : f32 to vector<14x64xf32>
    %60 = arith.maximumf %58, %59 : vector<14x64xf32>
    %cst_26 = arith.constant dense<0xFF800000> : vector<64xf32>
    %61 = vector.multi_reduction <maximumf>, %60, %cst_26 [0] : vector<14x64xf32> to vector<64xf32>
    %62 = vector.shape_cast %61 : vector<64xf32> to vector<1x64xf32>
    %c1_27 = arith.constant 1 : index
    %c64_28 = arith.constant 64 : index
    %63 = vector.load %arg8[%c1_27, %c64_28] : memref<2x192xf32, #tpu.memory_space<vmem>>, vector<1x64xf32>
    tpu.vector_store %arg8[%c1_27, %c64_28], %62 {strides = array<i32>} : memref<2x192xf32, #tpu.memory_space<vmem>>, vector<1x64xf32>,
    %c0_29 = arith.constant 0 : index
    %c0_30 = arith.constant 0 : index
    %c0_31 = arith.constant 0 : index
    %64 = vector.load %arg6[%c0_29, %c0_30, %c0_31] : memref<4x32x64xf32, #tpu.memory_space<vmem>>, vector<4x32x64xf32>
    %c0_32 = arith.constant 0 : index
    %c0_33 = arith.constant 0 : index
    %65 = vector.load %arg7[%c0_32, %c0_33] : memref<1x64xf32, #tpu.memory_space<vmem>>, vector<1x64xf32>
    %66 = vector.extract_strided_slice %64 {offsets = [0, 0, 0], sizes = [1, 32, 64], strides = [1, 1, 1]} : vector<4x32x64xf32> to vector<1x32x64xf32>
    %67 = vector.shape_cast %66 : vector<1x32x64xf32> to vector<32x64xf32>
    %cst_34 = arith.constant dense<0.000000e+00> : vector<32x64xf32>
    %68 = tpu.matmul %0, %67, %cst_34 {dimension_numbers = #tpu.dot_dimension_numbers<[1], [0], [0], [1], [0, 0, 1, 1], [], []>} : vector<32x32xf32>, vector<32x64xf32>, vector<32x64xf32> -> vector<32x64xf32>
    %69 = vector.extract_strided_slice %64 {offsets = [1, 0, 0], sizes = [1, 32, 64], strides = [1, 1, 1]} : vector<4x32x64xf32> to vector<1x32x64xf32>
    %70 = vector.shape_cast %69 : vector<1x32x64xf32> to vector<32x64xf32>
    %cst_35 = arith.constant dense<0.000000e+00> : vector<32x64xf32>
    %71 = tpu.matmul %0, %70, %cst_35 {dimension_numbers = #tpu.dot_dimension_numbers<[1], [0], [0], [1], [0, 0, 1, 1], [], []>} : vector<32x32xf32>, vector<32x64xf32>, vector<32x64xf32> -> vector<32x64xf32>
    %72 = vector.extract_strided_slice %64 {offsets = [2, 0, 0], sizes = [1, 32, 64], strides = [1, 1, 1]} : vector<4x32x64xf32> to vector<1x32x64xf32>
    %73 = vector.shape_cast %72 : vector<1x32x64xf32> to vector<32x64xf32>
    %cst_36 = arith.constant dense<0.000000e+00> : vector<32x64xf32>
    %74 = tpu.matmul %0, %73, %cst_36 {dimension_numbers = #tpu.dot_dimension_numbers<[1], [0], [0], [1], [0, 0, 1, 1], [], []>} : vector<32x32xf32>, vector<32x64xf32>, vector<32x64xf32> -> vector<32x64xf32>
    %75 = vector.extract_strided_slice %64 {offsets = [3, 0, 0], sizes = [1, 32, 64], strides = [1, 1, 1]} : vector<4x32x64xf32> to vector<1x32x64xf32>
    %76 = vector.shape_cast %75 : vector<1x32x64xf32> to vector<32x64xf32>
    %cst_37 = arith.constant dense<0.000000e+00> : vector<32x64xf32>
    %77 = tpu.matmul %0, %76, %cst_37 {dimension_numbers = #tpu.dot_dimension_numbers<[1], [0], [0], [1], [0, 0, 1, 1], [], []>} : vector<32x32xf32>, vector<32x64xf32>, vector<32x64xf32> -> vector<32x64xf32>
    %78 = vector.extract_strided_slice %68 {offsets = [0, 0], sizes = [13, 64], strides = [1, 1]} : vector<32x64xf32> to vector<13x64xf32>
    %79 = vector.extract_strided_slice %71 {offsets = [1, 0], sizes = [13, 64], strides = [1, 1]} : vector<32x64xf32> to vector<13x64xf32>
    %80 = arith.addf %78, %79 : vector<13x64xf32>
    %81 = vector.extract_strided_slice %74 {offsets = [2, 0], sizes = [13, 64], strides = [1, 1]} : vector<32x64xf32> to vector<13x64xf32>
    %82 = arith.addf %80, %81 : vector<13x64xf32>
    %83 = vector.extract_strided_slice %77 {offsets = [3, 0], sizes = [13, 64], strides = [1, 1]} : vector<32x64xf32> to vector<13x64xf32>
    %84 = arith.addf %82, %83 : vector<13x64xf32>
    %85 = vector.broadcast %65 : vector<1x64xf32> to vector<13x64xf32>
    %86 = arith.addf %84, %85 : vector<13x64xf32>
    %cst_38 = arith.constant 0.000000e+00 : f32
    %87 = vector.broadcast %cst_38 : f32 to vector<13x64xf32>
    %88 = arith.maximumf %86, %87 : vector<13x64xf32>
    %cst_39 = arith.constant dense<0xFF800000> : vector<64xf32>
    %89 = vector.multi_reduction <maximumf>, %88, %cst_39 [0] : vector<13x64xf32> to vector<64xf32>
    %90 = vector.shape_cast %89 : vector<64xf32> to vector<1x64xf32>
    %c0_40 = arith.constant 0 : index
    %c128 = arith.constant 128 : index
    %91 = vector.load %arg8[%c0_40, %c128] : memref<2x192xf32, #tpu.memory_space<vmem>>, vector<1x64xf32>
    tpu.vector_store %arg8[%c0_40, %c128], %90 {strides = array<i32>} : memref<2x192xf32, #tpu.memory_space<vmem>>, vector<1x64xf32>,
    %92 = vector.extract_strided_slice %68 {offsets = [16, 0], sizes = [13, 64], strides = [1, 1]} : vector<32x64xf32> to vector<13x64xf32>
    %93 = vector.extract_strided_slice %71 {offsets = [17, 0], sizes = [13, 64], strides = [1, 1]} : vector<32x64xf32> to vector<13x64xf32>
    %94 = arith.addf %92, %93 : vector<13x64xf32>
    %95 = vector.extract_strided_slice %74 {offsets = [18, 0], sizes = [13, 64], strides = [1, 1]} : vector<32x64xf32> to vector<13x64xf32>
    %96 = arith.addf %94, %95 : vector<13x64xf32>
    %97 = vector.extract_strided_slice %77 {offsets = [19, 0], sizes = [13, 64], strides = [1, 1]} : vector<32x64xf32> to vector<13x64xf32>
    %98 = arith.addf %96, %97 : vector<13x64xf32>
    %99 = vector.broadcast %65 : vector<1x64xf32> to vector<13x64xf32>
    %100 = arith.addf %98, %99 : vector<13x64xf32>
    %cst_41 = arith.constant 0.000000e+00 : f32
    %101 = vector.broadcast %cst_41 : f32 to vector<13x64xf32>
    %102 = arith.maximumf %100, %101 : vector<13x64xf32>
    %cst_42 = arith.constant dense<0xFF800000> : vector<64xf32>
    %103 = vector.multi_reduction <maximumf>, %102, %cst_42 [0] : vector<13x64xf32> to vector<64xf32>
    %104 = vector.shape_cast %103 : vector<64xf32> to vector<1x64xf32>
    %c1_43 = arith.constant 1 : index
    %c128_44 = arith.constant 128 : index
    %105 = vector.load %arg8[%c1_43, %c128_44] : memref<2x192xf32, #tpu.memory_space<vmem>>, vector<1x64xf32>
    tpu.vector_store %arg8[%c1_43, %c128_44], %104 {strides = array<i32>} : memref<2x192xf32, #tpu.memory_space<vmem>>, vector<1x64xf32>,
    return
  }
  func.func @transform_0(%arg0: i32) -> (i32, i32) {
    %c0_i32 = arith.constant 0 : i32
    %c0_i32_0 = arith.constant 0 : i32
    %c0_i32_1 = arith.constant 0 : i32
    return %c0_i32, %c0_i32_0 : i32, i32
  }
  func.func @transform_1(%arg0: i32) -> (i32, i32, i32) {
    %c0_i32 = arith.constant 0 : i32
    %c0_i32_0 = arith.constant 0 : i32
    %c0_i32_1 = arith.constant 0 : i32
    %c0_i32_2 = arith.constant 0 : i32
    return %c0_i32, %c0_i32_0, %c0_i32_1 : i32, i32, i32
  }
  func.func @transform_2(%arg0: i32) -> (i32, i32) {
    %c0_i32 = arith.constant 0 : i32
    %c0_i32_0 = arith.constant 0 : i32
    %c0_i32_1 = arith.constant 0 : i32
    return %c0_i32, %c0_i32_0 : i32, i32
  }
  func.func @transform_3(%arg0: i32) -> (i32, i32, i32) {
    %c0_i32 = arith.constant 0 : i32
    %c0_i32_0 = arith.constant 0 : i32
    %c0_i32_1 = arith.constant 0 : i32
    %c0_i32_2 = arith.constant 0 : i32
    return %c0_i32, %c0_i32_0, %c0_i32_1 : i32, i32, i32
  }
  func.func @transform_4(%arg0: i32) -> (i32, i32) {
    %c0_i32 = arith.constant 0 : i32
    %c0_i32_0 = arith.constant 0 : i32
    %c0_i32_1 = arith.constant 0 : i32
    return %c0_i32, %c0_i32_0 : i32, i32
  }
  func.func @transform_5(%arg0: i32) -> (i32, i32, i32) {
    %c0_i32 = arith.constant 0 : i32
    %c0_i32_0 = arith.constant 0 : i32
    %c0_i32_1 = arith.constant 0 : i32
    %c0_i32_2 = arith.constant 0 : i32
    return %c0_i32, %c0_i32_0, %c0_i32_1 : i32, i32, i32
  }
  func.func @transform_6(%arg0: i32) -> (i32, i32) {
    %c0_i32 = arith.constant 0 : i32
    %c0_i32_0 = arith.constant 0 : i32
    %c0_i32_1 = arith.constant 0 : i32
    return %c0_i32, %c0_i32_0 : i32, i32
  }
  func.func @transform_7(%arg0: i32) -> (i32, i32) {
    %c0_i32 = arith.constant 0 : i32
    %c0_i32_0 = arith.constant 0 : i32
    %c0_i32_1 = arith.constant 0 : i32
    return %c0_i32, %c0_i32_0 : i32, i32
  }
}

</mosaic_0001>

<llo_original>
// kernel: tpu_custom_call.1
$region0: #{tpu_custom_call.1}
  #allocation0 [shape = 'u32[]', space=smem, size = 0x4, offset = 0x4, fixed_abs, tag = 'smem constant byte address 0x4 - core index']
  #allocation1 [shape = 'u32[144,128]{1,0:T(1,128)}', space=vmem, size = 0x12000, scoped, tag = 'internal scratch']
  %s0 = inlined_call_operand.hbm [shape: f32[32,32], index: 0, kind: input, shape index: {}]
  %s1 = inlined_call_operand.hbm [shape: f32[2,32,64], index: 1, kind: input, shape index: {}]
  %s2 = inlined_call_operand.vmem [shape: f32[1,64], index: 2, kind: input, shape index: {}]
  %s3 = inlined_call_operand.hbm [shape: f32[3,32,64], index: 3, kind: input, shape index: {}]
  %s4 = inlined_call_operand.vmem [shape: f32[1,64], index: 4, kind: input, shape index: {}]
  %s5 = inlined_call_operand.hbm [shape: f32[4,32,64], index: 5, kind: input, shape index: {}]
  %s6 = inlined_call_operand.vmem [shape: f32[1,64], index: 6, kind: input, shape index: {}]
  %s7 = inlined_call_operand.hbm [shape: f32[2,192], index: 7, kind: output, shape index: {}]
  %s8 = sld [smem:[#allocation0]]
  $region54: #{tpu_custom_call.1} parent=0
    _
  %s10 = ssub.s32 1, %s8
  %s11 = scalar_select 0, %s10, %s8
  $region1: #{tpu_custom_call.1} parent=0
    #allocation2 [shape = 'u8[16384]{0}', space=vmem, size = 0x4000, scoped, tag = 'input window, operand 0, single buffered']
    #allocation3 [shape = 's32[1]{0}', space=sflag, size = 0x4, scoped, tag = 'scoped memory for tpu_custom_call.1']
    #allocation4 [shape = 's32[1]{0}', space=sflag, size = 0x4, scoped, tag = 'scoped memory for tpu_custom_call.1']
    #allocation5 [shape = 'u8[32768]{0}', space=vmem, size = 0x8000, scoped, tag = 'input window, operand 1, single buffered']
    #allocation6 [shape = 's32[1]{0}', space=sflag, size = 0x4, scoped, tag = 'scoped memory for tpu_custom_call.1']
    #allocation7 [shape = 'u8[49152]{0}', space=vmem, size = 0xc000, scoped, tag = 'input window, operand 3, single buffered']
    #allocation8 [shape = 'u8[65536]{0}', space=vmem, size = 0x10000, scoped, tag = 'input window, operand 5, single buffered']
    #allocation9 [shape = 's32[1]{0}', space=sflag, size = 0x4, scoped, tag = 'scoped memory for tpu_custom_call.1']
    #allocation10 [shape = 'u8[2048]{0}', space=vmem, size = 0x800, scoped, tag = 'output window, operand 0, single buffered']
    %12 = vsyncpa [#allocation3], 0
    %13 = vsyncpa [#allocation6], 0
    %14 = vsyncpa [#allocation9], 0
    %15 = vsyncpa [#allocation4], 0
    // Predicated region
    $region2: #{tpu_custom_call.1} parent=1 // pred_check
      _
    $region3: #{tpu_custom_call.1} parent=1 // pred_check_branch
      %17 = sbr.rel (0) target = $region5
    $region4: #{tpu_custom_call.1} parent=1 // pred_region
      %s19 = ssub.s32 512, 512
      %20 = vsyncadd [#allocation3], %s19
      %s21 = sshll.u32 [#allocation2], 4
      %s22 = int_to_ptr.vmem [resolvable:$true] %s21
      %27 = dma.hbm_to_vmem [thread:$0]  %s0, 512, %s22, [#allocation3], 128, 128, 8
    $region5: #{tpu_custom_call.1} parent=1 // pred_fallthru
      _
    // Predicated region
    $region6: #{tpu_custom_call.1} parent=1 // pred_check
      _
    $region7: #{tpu_custom_call.1} parent=1 // pred_check_branch
      %29 = sbr.rel (0) target = $region9
    $region8: #{tpu_custom_call.1} parent=1 // pred_region
      %s31 = ssub.s32 1024, 1024
      %32 = vsyncadd [#allocation6], %s31
      %s33 = sshll.u32 [#allocation5], 4
      %s34 = int_to_ptr.vmem [resolvable:$true] %s33
      %39 = dma.hbm_to_vmem [thread:$0]  %s1, 1024, %s34, [#allocation6], 128, 128, 8
    $region9: #{tpu_custom_call.1} parent=1 // pred_fallthru
      _
    // Predicated region
    $region10: #{tpu_custom_call.1} parent=1 // pred_check
      _
    $region11: #{tpu_custom_call.1} parent=1 // pred_check_branch
      %41 = sbr.rel (0) target = $region13
    $region12: #{tpu_custom_call.1} parent=1 // pred_region
      _
    $region13: #{tpu_custom_call.1} parent=1 // pred_fallthru
      _
    // Predicated region
    $region14: #{tpu_custom_call.1} parent=1 // pred_check
      _
    $region15: #{tpu_custom_call.1} parent=1 // pred_check_branch
      %43 = sbr.rel (0) target = $region17
    $region16: #{tpu_custom_call.1} parent=1 // pred_region
      %s45 = ssub.s32 1536, 1536
      %46 = vsyncadd [#allocation6], %s45
      %s47 = sshll.u32 [#allocation7], 4
      %s48 = int_to_ptr.vmem [resolvable:$true] %s47
      %53 = dma.hbm_to_vmem [thread:$0]  %s3, 1536, %s48, [#allocation6], 128, 128, 8
    $region17: #{tpu_custom_call.1} parent=1 // pred_fallthru
      _
    // Predicated region
    $region18: #{tpu_custom_call.1} parent=1 // pred_check
      _
    $region19: #{tpu_custom_call.1} parent=1 // pred_check_branch
      %55 = sbr.rel (0) target = $region21
    $region20: #{tpu_custom_call.1} parent=1 // pred_region
      _
    $region21: #{tpu_custom_call.1} parent=1 // pred_fallthru
      _
    // Predicated region
    $region22: #{tpu_custom_call.1} parent=1 // pred_check
      _
    $region23: #{tpu_custom_call.1} parent=1 // pred_check_branch
      %57 = sbr.rel (0) target = $region25
    $region24: #{tpu_custom_call.1} parent=1 // pred_region
      %s59 = ssub.s32 2048, 2048
      %60 = vsyncadd [#allocation9], %s59
      %s61 = sshll.u32 [#allocation8], 4
      %s62 = int_to_ptr.vmem [resolvable:$true] %s61
      %67 = dma.hbm_to_vmem [thread:$0]  %s5, 2048, %s62, [#allocation9], 128, 128, 8
    $region25: #{tpu_custom_call.1} parent=1 // pred_fallthru
      _
    // Predicated region
    $region26: #{tpu_custom_call.1} parent=1 // pred_check
      _
    $region27: #{tpu_custom_call.1} parent=1 // pred_check_branch
      %69 = sbr.rel (0) target = $region29
    $region28: #{tpu_custom_call.1} parent=1 // pred_region
      _
    $region29: #{tpu_custom_call.1} parent=1 // pred_fallthru
      _
    // Predicated region
    $region30: #{tpu_custom_call.1} parent=1 // pred_check
      _
    $region31: #{tpu_custom_call.1} parent=1 // pred_check_branch
      %71 = sbr.rel (0) target = $region33
    $region32: #{tpu_custom_call.1} parent=1 // pred_region
      %72 = dma.done [#allocation3], 512
    $region33: #{tpu_custom_call.1} parent=1 // pred_fallthru
      _
    // Predicated region
    $region34: #{tpu_custom_call.1} parent=1 // pred_check
      _
    $region35: #{tpu_custom_call.1} parent=1 // pred_check_branch
      %74 = sbr.rel (0) target = $region37
    $region36: #{tpu_custom_call.1} parent=1 // pred_region
      %75 = dma.done [#allocation6], 1024
    $region37: #{tpu_custom_call.1} parent=1 // pred_fallthru
      _
    // Predicated region
    $region38: #{tpu_custom_call.1} parent=1 // pred_check
      _
    $region39: #{tpu_custom_call.1} parent=1 // pred_check_branch
      %77 = sbr.rel (0) target = $region41
    $region40: #{tpu_custom_call.1} parent=1 // pred_region
      %78 = dma.done [#allocation6], 1536
    $region41: #{tpu_custom_call.1} parent=1 // pred_fallthru
      _
    // Predicated region
    $region42: #{tpu_custom_call.1} parent=1 // pred_check
      _
    $region43: #{tpu_custom_call.1} parent=1 // pred_check_branch
      %80 = sbr.rel (0) target = $region45
    $region44: #{tpu_custom_call.1} parent=1 // pred_region
      %81 = dma.done [#allocation9], 2048
    $region45: #{tpu_custom_call.1} parent=1 // pred_fallthru
      _
    %v82 = vld [vmem:[#allocation2] sm:$0xff]
    %v83 = vld [vmem:[#allocation2 + $0x8] sm:$0xff]
    %v84 = vld [vmem:[#allocation2 + $0x10] sm:$0xff]
    %v85 = vld [vmem:[#allocation2 + $0x18] sm:$0xff]
    %v86 = vld [vmem:[#allocation5] sm:$0xff]
    %v87 = vld [vmem:[#allocation5 + $0x8] sm:$0xff]
    %v88 = vld [vmem:[#allocation5 + $0x10] sm:$0xff]
    %v89 = vld [vmem:[#allocation5 + $0x18] sm:$0xff]
    %v90 = vld [vmem:[#allocation5 + $0x20] sm:$0xff]
    %v91 = vld [vmem:[#allocation5 + $0x28] sm:$0xff]
    %v92 = vld [vmem:[#allocation5 + $0x30] sm:$0xff]
    %v93 = vld [vmem:[#allocation5 + $0x38] sm:$0xff]
    %v94 = vld [vmem:[%s2] sm:$0x1]
    %vm95 = vcmask 261120
    %v97 = vsel %vm95, %v82, 0
    %v100 = vsel %vm95, %v83, 0
    %v103 = vsel %vm95, %v84, 0
    %v106 = vsel %vm95, %v85, 0
    %108 = vmatprep.subr.mxu0 0.0
    %109 = vmatpush1.msra.mxu0 %v86
    %110 = vmatprep.subr.mxu0 0.0
    %111 = vmatpush1.msra.mxu0 %v87
    %112 = vmatprep.subr.mxu0 0.0
    %113 = vmatpush1.msra.mxu0 %v88
    %114 = vmatprep.subr.mxu0 0.0
    %115 = vmatpush1.msra.mxu0 %v89
    %116 = vmatprep.subr.mxu0 0.0
    %117 = vmatpush1.msra.mxu0 0.0
    %118 = vmatprep.subr.mxu0 0.0
    %119 = vmatpush1.msra.mxu0 0.0
    %120 = vmatprep.subr.mxu0 0.0
    %121 = vmatpush1.msra.mxu0 0.0
    %122 = vmatprep.subr.mxu0 0.0
    %123 = vmatpush1.msra.mxu0 0.0
    %124 = vmatprep.subr.mxu0 0.0
    %125 = vmatpush1.msra.mxu0 0.0
    %126 = vmatprep.subr.mxu0 0.0
    %127 = vmatpush1.msra.mxu0 0.0
    %128 = vmatprep.subr.mxu0 0.0
    %129 = vmatpush1.msra.mxu0 0.0
    %130 = vmatprep.subr.mxu0 0.0
    %131 = vmatpush1.msra.mxu0 0.0
    %132 = vmatprep.subr.mxu0 0.0
    %133 = vmatpush1.msra.mxu0 0.0
    %134 = vmatprep.subr.mxu0 0.0
    %135 = vmatpush1.msra.mxu0 0.0
    %136 = vmatprep.subr.mxu0 0.0
    %137 = vmatpush1.msra.mxu0 0.0
    %138 = vmatprep.subr.mxu0 0.0
    %139 = vmatpush1.msra.mxu0 0.0
    %140 = vmatprep.subr.mxu0 0.0
    %141 = vmatpush1.msra.mxu0 0.0
    %142 = vmatprep.subr.mxu0 0.0
    %143 = vmatpush1.msra.mxu0 0.0
    %144 = vmatprep.subr.mxu0 0.0
    %145 = vmatpush1.msra.mxu0 0.0
    %146 = vmatprep.subr.mxu0 0.0
    %147 = vmatpush1.msra.mxu0 0.0
    %148 = vmatprep.subr.mxu0 0.0
    %149 = vmatpush1.msra.mxu0 0.0
    %150 = vmatprep.subr.mxu0 0.0
    %151 = vmatpush1.msra.mxu0 0.0
    %152 = vmatprep.subr.mxu0 0.0
    %153 = vmatpush1.msra.mxu0 0.0
    %154 = vmatprep.subr.mxu0 0.0
    %155 = vmatpush1.msra.mxu0 0.0
    %156 = vmatprep.subr.mxu0 0.0
    %157 = vmatpush1.msra.mxu0 0.0
    %158 = vmatprep.subr.mxu0 0.0
    %159 = vmatpush1.msra.mxu0 0.0
    %160 = vmatprep.subr.mxu0 0.0
    %161 = vmatpush1.msra.mxu0 0.0
    %162 = vmatprep.subr.mxu0 0.0
    %163 = vmatpush1.msra.mxu0 0.0
    %164 = vmatprep.subr.mxu0 0.0
    %165 = vmatpush1.msra.mxu0 0.0
    %166 = vmatprep.subr.mxu0 0.0
    %167 = vmatpush1.msra.mxu0 0.0
    %168 = vmatprep.subr.mxu0 0.0
    %169 = vmatpush1.msra.mxu0 0.0
    %170 = vmatprep.subr.mxu0 0.0
    %171 = vmatpush1.msra.mxu0 0.0
    %172 = vmatprep.mubr.f32.mxu0 0.0
    %173 = vmatmul.mubr.f32.gmra.mrb[0].mxu0 %v97
    %v174 = vpop.f32.mrb[0].mxu0
    %v175 = vadd.f32 0.0, %v174
    %v176 = vpop.f32.mrb[0].mxu0
    %177 = vmatprep.mubr.f32.mxu0 0.0
    %178 = vmatmul.mubr.f32.gmra.mrb[0].mxu0 %v100
    %v179 = vpop.f32.mrb[0].mxu0
    %v180 = vadd.f32 0.0, %v179
    %v181 = vpop.f32.mrb[0].mxu0
    %182 = vmatprep.mubr.f32.mxu0 0.0
    %183 = vmatmul.mubr.f32.gmra.mrb[0].mxu0 %v103
    %v184 = vpop.f32.mrb[0].mxu0
    %v185 = vadd.f32 0.0, %v184
    %v186 = vpop.f32.mrb[0].mxu0
    %187 = vmatprep.mubr.f32.mxu0 0.0
    %188 = vmatmul.mubr.f32.gmra.mrb[0].mxu0 %v106
    %v189 = vpop.f32.mrb[0].mxu0
    %v190 = vadd.f32 0.0, %v189
    %v191 = vpop.f32.mrb[0].mxu0
    %192 = vdwg.mxu0
    %193 = vmatprep.subr.mxu0 0.0
    %194 = vmatpush1.msra.mxu0 %v90
    %195 = vmatprep.subr.mxu0 0.0
    %196 = vmatpush1.msra.mxu0 %v91
    %197 = vmatprep.subr.mxu0 0.0
    %198 = vmatpush1.msra.mxu0 %v92
    %199 = vmatprep.subr.mxu0 0.0
    %200 = vmatpush1.msra.mxu0 %v93
    %201 = vmatprep.subr.mxu0 0.0
    %202 = vmatpush1.msra.mxu0 0.0
    %203 = vmatprep.subr.mxu0 0.0
    %204 = vmatpush1.msra.mxu0 0.0
    %205 = vmatprep.subr.mxu0 0.0
    %206 = vmatpush1.msra.mxu0 0.0
    %207 = vmatprep.subr.mxu0 0.0
    %208 = vmatpush1.msra.mxu0 0.0
    %209 = vmatprep.subr.mxu0 0.0
    %210 = vmatpush1.msra.mxu0 0.0
    %211 = vmatprep.subr.mxu0 0.0
    %212 = vmatpush1.msra.mxu0 0.0
    %213 = vmatprep.subr.mxu0 0.0
    %214 = vmatpush1.msra.mxu0 0.0
    %215 = vmatprep.subr.mxu0 0.0
    %216 = vmatpush1.msra.mxu0 0.0
    %217 = vmatprep.subr.mxu0 0.0
    %218 = vmatpush1.msra.mxu0 0.0
    %219 = vmatprep.subr.mxu0 0.0
    %220 = vmatpush1.msra.mxu0 0.0
    %221 = vmatprep.subr.mxu0 0.0
    %222 = vmatpush1.msra.mxu0 0.0
    %223 = vmatprep.subr.mxu0 0.0
    %224 = vmatpush1.msra.mxu0 0.0
    %225 = vmatprep.subr.mxu0 0.0
    %226 = vmatpush1.msra.mxu0 0.0
    %227 = vmatprep.subr.mxu0 0.0
    %228 = vmatpush1.msra.mxu0 0.0
    %229 = vmatprep.subr.mxu0 0.0
    %230 = vmatpush1.msra.mxu0 0.0
    %231 = vmatprep.subr.mxu0 0.0
    %232 = vmatpush1.msra.mxu0 0.0
    %233 = vmatprep.subr.mxu0 0.0
    %234 = vmatpush1.msra.mxu0 0.0
    %235 = vmatprep.subr.mxu0 0.0
    %236 = vmatpush1.msra.mxu0 0.0
    %237 = vmatprep.subr.mxu0 0.0
    %238 = vmatpush1.msra.mxu0 0.0
    %239 = vmatprep.subr.mxu0 0.0
    %240 = vmatpush1.msra.mxu0 0.0
    %241 = vmatprep.subr.mxu0 0.0
    %242 = vmatpush1.msra.mxu0 0.0
    %243 = vmatprep.subr.mxu0 0.0
    %244 = vmatpush1.msra.mxu0 0.0
    %245 = vmatprep.subr.mxu0 0.0
    %246 = vmatpush1.msra.mxu0 0.0
    %247 = vmatprep.subr.mxu0 0.0
    %248 = vmatpush1.msra.mxu0 0.0
    %249 = vmatprep.subr.mxu0 0.0
    %250 = vmatpush1.msra.mxu0 0.0
    %251 = vmatprep.subr.mxu0 0.0
    %252 = vmatpush1.msra.mxu0 0.0
    %253 = vmatprep.subr.mxu0 0.0
    %254 = vmatpush1.msra.mxu0 0.0
    %255 = vmatprep.subr.mxu0 0.0
    %256 = vmatpush1.msra.mxu0 0.0
    %257 = vmatprep.mubr.f32.mxu0 0.0
    %258 = vmatmul.mubr.f32.gmra.mrb[0].mxu0 %v97
    %v259 = vpop.f32.mrb[0].mxu0
    %v260 = vadd.f32 0.0, %v259
    %v261 = vpop.f32.mrb[0].mxu0
    %262 = vmatprep.mubr.f32.mxu0 0.0
    %263 = vmatmul.mubr.f32.gmra.mrb[0].mxu0 %v100
    %v264 = vpop.f32.mrb[0].mxu0
    %v265 = vadd.f32 0.0, %v264
    %v266 = vpop.f32.mrb[0].mxu0
    %267 = vmatprep.mubr.f32.mxu0 0.0
    %268 = vmatmul.mubr.f32.gmra.mrb[0].mxu0 %v103
    %v269 = vpop.f32.mrb[0].mxu0
    %v270 = vadd.f32 0.0, %v269
    %v271 = vpop.f32.mrb[0].mxu0
    %272 = vmatprep.mubr.f32.mxu0 0.0
    %273 = vmatmul.mubr.f32.gmra.mrb[0].mxu0 %v106
    %v274 = vpop.f32.mrb[0].mxu0
    %v275 = vadd.f32 0.0, %v274
    %v276 = vpop.f32.mrb[0].mxu0
    %277 = vdwg.mxu0
    %vm280 = vcmask 1046528
    %v281 = vrot.slane %v260, 1
    %v282 = vrot.slane %v265, 1
    %v283 = vsel %vm280, %v281, %v282
    %v286 = vadd.f32 %v175, %v283
    %v287 = vadd.f32 %v180, %v282
    %v289 = vlaneseq
    %v290 = vshrl.u32 %v289, 7
    %v291 = vsub.s32 0, %v290
    %v292 = vrot.slane %v94, %v291
    %v294 = vadd.f32 %v286, %v292
    %v295 = vadd.f32 %v287, %v292
    %v296 = vmax.f32 %v294, 0.0
    %v297 = vmax.f32 %v295, 0.0
    %vm298 = vcmask 523264
    %v299 = vsel %vm298, %v296, -inf
    %vm300 = vcmask 522240
    %v301 = vsel %vm300, %v297, -inf
    %v302 = vmax.f32 %v299, %v301
    %v303 = vrot.slane %v302, 4
    %v304 = vmax.f32 %v302, %v303
    %v305 = vrot.slane %v304, 2
    %v306 = vmax.f32 %v304, %v305
    %v307 = vrot.slane %v306, 1
    %v308 = vmax.f32 %v306, %v307
    %vm309 = vcmask 516096
    %310 = vst.msk [vmem:[#allocation10] sm:$0x1] %vm309, %v308
    %v313 = vrot.slane %v270, 1
    %v314 = vrot.slane %v275, 1
    %v315 = vsel %vm280, %v313, %v314
    %v318 = vadd.f32 %v185, %v315
    %v319 = vadd.f32 %v190, %v314
    %v320 = vadd.f32 %v318, %v292
    %v321 = vadd.f32 %v319, %v292
    %v322 = vmax.f32 %v320, 0.0
    %v323 = vmax.f32 %v321, 0.0
    %v324 = vsel %vm298, %v322, -inf
    %v325 = vsel %vm300, %v323, -inf
    %v326 = vmax.f32 %v324, %v325
    %v327 = vrot.slane %v326, 4
    %v328 = vmax.f32 %v326, %v327
    %v329 = vrot.slane %v328, 2
    %v330 = vmax.f32 %v328, %v329
    %v331 = vrot.slane %v330, 1
    %v332 = vmax.f32 %v330, %v331
    %333 = vst.msk [vmem:[#allocation10 + $0x1] sm:$0x1] %vm309, %v332
    %v334 = vld [vmem:[#allocation7] sm:$0xff]
    %v335 = vld [vmem:[#allocation7 + $0x8] sm:$0xff]
    %v336 = vld [vmem:[#allocation7 + $0x10] sm:$0xff]
    %v337 = vld [vmem:[#allocation7 + $0x18] sm:$0xff]
    %v338 = vld [vmem:[#allocation7 + $0x20] sm:$0xff]
    %v339 = vld [vmem:[#allocation7 + $0x28] sm:$0xff]
    %v340 = vld [vmem:[#allocation7 + $0x30] sm:$0xff]
    %v341 = vld [vmem:[#allocation7 + $0x38] sm:$0xff]
    %v342 = vld [vmem:[#allocation7 + $0x40] sm:$0xff]
    %v343 = vld [vmem:[#allocation7 + $0x48] sm:$0xff]
    %v344 = vld [vmem:[#allocation7 + $0x50] sm:$0xff]
    %v345 = vld [vmem:[#allocation7 + $0x58] sm:$0xff]
    %v346 = vld [vmem:[%s4] sm:$0x1]
    %347 = vmatprep.subr.mxu0 0.0
    %348 = vmatpush1.msra.mxu0 %v334
    %349 = vmatprep.subr.mxu0 0.0
    %350 = vmatpush1.msra.mxu0 %v335
    %351 = vmatprep.subr.mxu0 0.0
    %352 = vmatpush1.msra.mxu0 %v336
    %353 = vmatprep.subr.mxu0 0.0
    %354 = vmatpush1.msra.mxu0 %v337
    %355 = vmatprep.subr.mxu0 0.0
    %356 = vmatpush1.msra.mxu0 0.0
    %357 = vmatprep.subr.mxu0 0.0
    %358 = vmatpush1.msra.mxu0 0.0
    %359 = vmatprep.subr.mxu0 0.0
    %360 = vmatpush1.msra.mxu0 0.0
    %361 = vmatprep.subr.mxu0 0.0
    %362 = vmatpush1.msra.mxu0 0.0
    %363 = vmatprep.subr.mxu0 0.0
    %364 = vmatpush1.msra.mxu0 0.0
    %365 = vmatprep.subr.mxu0 0.0
    %366 = vmatpush1.msra.mxu0 0.0
    %367 = vmatprep.subr.mxu0 0.0
    %368 = vmatpush1.msra.mxu0 0.0
    %369 = vmatprep.subr.mxu0 0.0
    %370 = vmatpush1.msra.mxu0 0.0
    %371 = vmatprep.subr.mxu0 0.0
    %372 = vmatpush1.msra.mxu0 0.0
    %373 = vmatprep.subr.mxu0 0.0
    %374 = vmatpush1.msra.mxu0 0.0
    %375 = vmatprep.subr.mxu0 0.0
    %376 = vmatpush1.msra.mxu0 0.0
    %377 = vmatprep.subr.mxu0 0.0
    %378 = vmatpush1.msra.mxu0 0.0
    %379 = vmatprep.subr.mxu0 0.0
    %380 = vmatpush1.msra.mxu0 0.0
    %381 = vmatprep.subr.mxu0 0.0
    %382 = vmatpush1.msra.mxu0 0.0
    %383 = vmatprep.subr.mxu0 0.0
    %384 = vmatpush1.msra.mxu0 0.0
    %385 = vmatprep.subr.mxu0 0.0
    %386 = vmatpush1.msra.mxu0 0.0
    %387 = vmatprep.subr.mxu0 0.0
    %388 = vmatpush1.msra.mxu0 0.0
    %389 = vmatprep.subr.mxu0 0.0
    %390 = vmatpush1.msra.mxu0 0.0
    %391 = vmatprep.subr.mxu0 0.0
    %392 = vmatpush1.msra.mxu0 0.0
    %393 = vmatprep.subr.mxu0 0.0
    %394 = vmatpush1.msra.mxu0 0.0
    %395 = vmatprep.subr.mxu0 0.0
    %396 = vmatpush1.msra.mxu0 0.0
    %397 = vmatprep.subr.mxu0 0.0
    %398 = vmatpush1.msra.mxu0 0.0
    %399 = vmatprep.subr.mxu0 0.0
    %400 = vmatpush1.msra.mxu0 0.0
    %401 = vmatprep.subr.mxu0 0.0
    %402 = vmatpush1.msra.mxu0 0.0
    %403 = vmatprep.subr.mxu0 0.0
    %404 = vmatpush1.msra.mxu0 0.0
    %405 = vmatprep.subr.mxu0 0.0
    %406 = vmatpush1.msra.mxu0 0.0
    %407 = vmatprep.subr.mxu0 0.0
    %408 = vmatpush1.msra.mxu0 0.0
    %409 = vmatprep.subr.mxu0 0.0
    %410 = vmatpush1.msra.mxu0 0.0
    %411 = vmatprep.mubr.f32.mxu0 0.0
    %412 = vmatmul.mubr.f32.gmra.mrb[0].mxu0 %v97
    %v413 = vpop.f32.mrb[0].mxu0
    %v414 = vadd.f32 0.0, %v413
    %v415 = vpop.f32.mrb[0].mxu0
    %416 = vmatprep.mubr.f32.mxu0 0.0
    %417 = vmatmul.mubr.f32.gmra.mrb[0].mxu0 %v100
    %v418 = vpop.f32.mrb[0].mxu0
    %v419 = vadd.f32 0.0, %v418
    %v420 = vpop.f32.mrb[0].mxu0
    %421 = vmatprep.mubr.f32.mxu0 0.0
    %422 = vmatmul.mubr.f32.gmra.mrb[0].mxu0 %v103
    %v423 = vpop.f32.mrb[0].mxu0
    %v424 = vadd.f32 0.0, %v423
    %v425 = vpop.f32.mrb[0].mxu0
    %426 = vmatprep.mubr.f32.mxu0 0.0
    %427 = vmatmul.mubr.f32.gmra.mrb[0].mxu0 %v106
    %v428 = vpop.f32.mrb[0].mxu0
    %v429 = vadd.f32 0.0, %v428
    %v430 = vpop.f32.mrb[0].mxu0
    %431 = vdwg.mxu0
    %432 = vmatprep.subr.mxu0 0.0
    %433 = vmatpush1.msra.mxu0 %v338
    %434 = vmatprep.subr.mxu0 0.0
    %435 = vmatpush1.msra.mxu0 %v339
    %436 = vmatprep.subr.mxu0 0.0
    %437 = vmatpush1.msra.mxu0 %v340
    %438 = vmatprep.subr.mxu0 0.0
    %439 = vmatpush1.msra.mxu0 %v341
    %440 = vmatprep.subr.mxu0 0.0
    %441 = vmatpush1.msra.mxu0 0.0
    %442 = vmatprep.subr.mxu0 0.0
    %443 = vmatpush1.msra.mxu0 0.0
    %444 = vmatprep.subr.mxu0 0.0
    %445 = vmatpush1.msra.mxu0 0.0
    %446 = vmatprep.subr.mxu0 0.0
    %447 = vmatpush1.msra.mxu0 0.0
    %448 = vmatprep.subr.mxu0 0.0
    %449 = vmatpush1.msra.mxu0 0.0
    %450 = vmatprep.subr.mxu0 0.0
    %451 = vmatpush1.msra.mxu0 0.0
    %452 = vmatprep.subr.mxu0 0.0
    %453 = vmatpush1.msra.mxu0 0.0
    %454 = vmatprep.subr.mxu0 0.0
    %455 = vmatpush1.msra.mxu0 0.0
    %456 = vmatprep.subr.mxu0 0.0
    %457 = vmatpush1.msra.mxu0 0.0
    %458 = vmatprep.subr.mxu0 0.0
    %459 = vmatpush1.msra.mxu0 0.0
    %460 = vmatprep.subr.mxu0 0.0
    %461 = vmatpush1.msra.mxu0 0.0
    %462 = vmatprep.subr.mxu0 0.0
    %463 = vmatpush1.msra.mxu0 0.0
    %464 = vmatprep.subr.mxu0 0.0
    %465 = vmatpush1.msra.mxu0 0.0
    %466 = vmatprep.subr.mxu0 0.0
    %467 = vmatpush1.msra.mxu0 0.0
    %468 = vmatprep.subr.mxu0 0.0
    %469 = vmatpush1.msra.mxu0 0.0
    %470 = vmatprep.subr.mxu0 0.0
    %471 = vmatpush1.msra.mxu0 0.0
    %472 = vmatprep.subr.mxu0 0.0
    %473 = vmatpush1.msra.mxu0 0.0
    %474 = vmatprep.subr.mxu0 0.0
    %475 = vmatpush1.msra.mxu0 0.0
    %476 = vmatprep.subr.mxu0 0.0
    %477 = vmatpush1.msra.mxu0 0.0
    %478 = vmatprep.subr.mxu0 0.0
    %479 = vmatpush1.msra.mxu0 0.0
    %480 = vmatprep.subr.mxu0 0.0
    %481 = vmatpush1.msra.mxu0 0.0
    %482 = vmatprep.subr.mxu0 0.0
    %483 = vmatpush1.msra.mxu0 0.0
    %484 = vmatprep.subr.mxu0 0.0
    %485 = vmatpush1.msra.mxu0 0.0
    %486 = vmatprep.subr.mxu0 0.0
    %487 = vmatpush1.msra.mxu0 0.0
    %488 = vmatprep.subr.mxu0 0.0
    %489 = vmatpush1.msra.mxu0 0.0
    %490 = vmatprep.subr.mxu0 0.0
    %491 = vmatpush1.msra.mxu0 0.0
    %492 = vmatprep.subr.mxu0 0.0
    %493 = vmatpush1.msra.mxu0 0.0
    %494 = vmatprep.subr.mxu0 0.0
    %495 = vmatpush1.msra.mxu0 0.0
    %496 = vmatprep.mubr.f32.mxu0 0.0
    %497 = vmatmul.mubr.f32.gmra.mrb[0].mxu0 %v97
    %v498 = vpop.f32.mrb[0].mxu0
    %v499 = vadd.f32 0.0, %v498
    %v500 = vpop.f32.mrb[0].mxu0
    %501 = vmatprep.mubr.f32.mxu0 0.0
    %502 = vmatmul.mubr.f32.gmra.mrb[0].mxu0 %v100
    %v503 = vpop.f32.mrb[0].mxu0
    %v504 = vadd.f32 0.0, %v503
    %v505 = vpop.f32.mrb[0].mxu0
    %506 = vmatprep.mubr.f32.mxu0 0.0
    %507 = vmatmul.mubr.f32.gmra.mrb[0].mxu0 %v103
    %v508 = vpop.f32.mrb[0].mxu0
    %v509 = vadd.f32 0.0, %v508
    %v510 = vpop.f32.mrb[0].mxu0
    %511 = vmatprep.mubr.f32.mxu0 0.0
    %512 = vmatmul.mubr.f32.gmra.mrb[0].mxu0 %v106
    %v513 = vpop.f32.mrb[0].mxu0
    %v514 = vadd.f32 0.0, %v513
    %v515 = vpop.f32.mrb[0].mxu0
    %516 = vdwg.mxu0
    %517 = vmatprep.subr.mxu0 0.0
    %518 = vmatpush1.msra.mxu0 %v342
    %519 = vmatprep.subr.mxu0 0.0
    %520 = vmatpush1.msra.mxu0 %v343
    %521 = vmatprep.subr.mxu0 0.0
    %522 = vmatpush1.msra.mxu0 %v344
    %523 = vmatprep.subr.mxu0 0.0
    %524 = vmatpush1.msra.mxu0 %v345
    %525 = vmatprep.subr.mxu0 0.0
    %526 = vmatpush1.msra.mxu0 0.0
    %527 = vmatprep.subr.mxu0 0.0
    %528 = vmatpush1.msra.mxu0 0.0
    %529 = vmatprep.subr.mxu0 0.0
    %530 = vmatpush1.msra.mxu0 0.0
    %531 = vmatprep.subr.mxu0 0.0
    %532 = vmatpush1.msra.mxu0 0.0
    %533 = vmatprep.subr.mxu0 0.0
    %534 = vmatpush1.msra.mxu0 0.0
    %535 = vmatprep.subr.mxu0 0.0
    %536 = vmatpush1.msra.mxu0 0.0
    %537 = vmatprep.subr.mxu0 0.0
    %538 = vmatpush1.msra.mxu0 0.0
    %539 = vmatprep.subr.mxu0 0.0
    %540 = vmatpush1.msra.mxu0 0.0
    %541 = vmatprep.subr.mxu0 0.0
    %542 = vmatpush1.msra.mxu0 0.0
    %543 = vmatprep.subr.mxu0 0.0
    %544 = vmatpush1.msra.mxu0 0.0
    %545 = vmatprep.subr.mxu0 0.0
    %546 = vmatpush1.msra.mxu0 0.0
    %547 = vmatprep.subr.mxu0 0.0
    %548 = vmatpush1.msra.mxu0 0.0
    %549 = vmatprep.subr.mxu0 0.0
    %550 = vmatpush1.msra.mxu0 0.0
    %551 = vmatprep.subr.mxu0 0.0
    %552 = vmatpush1.msra.mxu0 0.0
    %553 = vmatprep.subr.mxu0 0.0
    %554 = vmatpush1.msra.mxu0 0.0
    %555 = vmatprep.subr.mxu0 0.0
    %556 = vmatpush1.msra.mxu0 0.0
    %557 = vmatprep.subr.mxu0 0.0
    %558 = vmatpush1.msra.mxu0 0.0
    %559 = vmatprep.subr.mxu0 0.0
    %560 = vmatpush1.msra.mxu0 0.0
    %561 = vmatprep.subr.mxu0 0.0
    %562 = vmatpush1.msra.mxu0 0.0
    %563 = vmatprep.subr.mxu0 0.0
    %564 = vmatpush1.msra.mxu0 0.0
    %565 = vmatprep.subr.mxu0 0.0
    %566 = vmatpush1.msra.mxu0 0.0
    %567 = vmatprep.subr.mxu0 0.0
    %568 = vmatpush1.msra.mxu0 0.0
    %569 = vmatprep.subr.mxu0 0.0
    %570 = vmatpush1.msra.mxu0 0.0
    %571 = vmatprep.subr.mxu0 0.0
    %572 = vmatpush1.msra.mxu0 0.0
    %573 = vmatprep.subr.mxu0 0.0
    %574 = vmatpush1.msra.mxu0 0.0
    %575 = vmatprep.subr.mxu0 0.0
    %576 = vmatpush1.msra.mxu0 0.0
    %577 = vmatprep.subr.mxu0 0.0
    %578 = vmatpush1.msra.mxu0 0.0
    %579 = vmatprep.subr.mxu0 0.0
    %580 = vmatpush1.msra.mxu0 0.0
    %581 = vmatprep.mubr.f32.mxu0 0.0
    %582 = vmatmul.mubr.f32.gmra.mrb[0].mxu0 %v97
    %v583 = vpop.f32.mrb[0].mxu0
    %v584 = vadd.f32 0.0, %v583
    %v585 = vpop.f32.mrb[0].mxu0
    %586 = vmatprep.mubr.f32.mxu0 0.0
    %587 = vmatmul.mubr.f32.gmra.mrb[0].mxu0 %v100
    %v588 = vpop.f32.mrb[0].mxu0
    %v589 = vadd.f32 0.0, %v588
    %v590 = vpop.f32.mrb[0].mxu0
    %591 = vmatprep.mubr.f32.mxu0 0.0
    %592 = vmatmul.mubr.f32.gmra.mrb[0].mxu0 %v103
    %v593 = vpop.f32.mrb[0].mxu0
    %v594 = vadd.f32 0.0, %v593
    %v595 = vpop.f32.mrb[0].mxu0
    %596 = vmatprep.mubr.f32.mxu0 0.0
    %597 = vmatmul.mubr.f32.gmra.mrb[0].mxu0 %v106
    %v598 = vpop.f32.mrb[0].mxu0
    %v599 = vadd.f32 0.0, %v598
    %v600 = vpop.f32.mrb[0].mxu0
    %601 = vdwg.mxu0
    %v604 = vrot.slane %v499, 1
    %v605 = vrot.slane %v504, 1
    %v606 = vsel %vm280, %v604, %v605
    %v609 = vadd.f32 %v414, %v606
    %v610 = vadd.f32 %v419, %v605
    %vm613 = vcmask 1045504
    %v614 = vrot.slane %v584, 2
    %v615 = vrot.slane %v589, 2
    %v616 = vsel %vm613, %v614, %v615
    %v619 = vadd.f32 %v609, %v616
    %v620 = vadd.f32 %v610, %v615
    %v622 = vlaneseq
    %v623 = vshrl.u32 %v622, 7
    %v624 = vsub.s32 0, %v623
    %v625 = vrot.slane %v346, %v624
    %v627 = vadd.f32 %v619, %v625
    %v628 = vadd.f32 %v620, %v625
    %v629 = vmax.f32 %v627, 0.0
    %v630 = vmax.f32 %v628, 0.0
    %v631 = vsel %vm298, %v629, -inf
    %vm632 = vcmask 521216
    %v633 = vsel %vm632, %v630, -inf
    %v634 = vmax.f32 %v631, %v633
    %v635 = vrot.slane %v634, 4
    %v636 = vmax.f32 %v634, %v635
    %v637 = vrot.slane %v636, 2
    %v638 = vmax.f32 %v636, %v637
    %v639 = vrot.slane %v638, 1
    %v640 = vmax.f32 %v638, %v639
    %v643 = vunpack.c.l.s4 1983009808
    %v644 = vunpack.c.0.s8 %v643
    %v645 = vlaneseq
    %v646 = vshrl.u32 %v645, 7
    %v647 = vsub.s32 %v644, %v646
    %v648 = vrot.slane %v640, %v647
    %649 = vrot.lane.b32.xlu0 %v648, 64
    %v650 = vpop.permute.xlu0 %649
    %vm652 = vcmask 1040896
    %653 = vst.msk [vmem:[#allocation10] sm:$0x1] %vm652, %v650
    %v656 = vrot.slane %v509, 1
    %v657 = vrot.slane %v514, 1
    %v658 = vsel %vm280, %v656, %v657
    %v661 = vadd.f32 %v424, %v658
    %v662 = vadd.f32 %v429, %v657
    %v665 = vrot.slane %v594, 2
    %v666 = vrot.slane %v599, 2
    %v667 = vsel %vm613, %v665, %v666
    %v670 = vadd.f32 %v661, %v667
    %v671 = vadd.f32 %v662, %v666
    %v672 = vadd.f32 %v670, %v625
    %v673 = vadd.f32 %v671, %v625
    %v674 = vmax.f32 %v672, 0.0
    %v675 = vmax.f32 %v673, 0.0
    %v676 = vsel %vm298, %v674, -inf
    %v677 = vsel %vm632, %v675, -inf
    %v678 = vmax.f32 %v676, %v677
    %v679 = vrot.slane %v678, 4
    %v680 = vmax.f32 %v678, %v679
    %v681 = vrot.slane %v680, 2
    %v682 = vmax.f32 %v680, %v681
    %v683 = vrot.slane %v682, 1
    %v684 = vmax.f32 %v682, %v683
    %v687 = vunpack.c.l.s4 1983009808
    %v688 = vunpack.c.0.s8 %v687
    %v689 = vlaneseq
    %v690 = vshrl.u32 %v689, 7
    %v691 = vsub.s32 %v688, %v690
    %v692 = vrot.slane %v684, %v691
    %693 = vrot.lane.b32.xlu0 %v692, 64
    %v694 = vpop.permute.xlu0 %693
    %696 = vst.msk [vmem:[#allocation10 + $0x1] sm:$0x1] %vm652, %v694
    %v697 = vld [vmem:[#allocation8] sm:$0xff]
    %v698 = vld [vmem:[#allocation8 + $0x8] sm:$0xff]
    %v699 = vld [vmem:[#allocation8 + $0x10] sm:$0xff]
    %v700 = vld [vmem:[#allocation8 + $0x18] sm:$0xff]
    %v701 = vld [vmem:[#allocation8 + $0x20] sm:$0xff]
    %v702 = vld [vmem:[#allocation8 + $0x28] sm:$0xff]
    %v703 = vld [vmem:[#allocation8 + $0x30] sm:$0xff]
    %v704 = vld [vmem:[#allocation8 + $0x38] sm:$0xff]
    %v705 = vld [vmem:[#allocation8 + $0x40] sm:$0xff]
    %v706 = vld [vmem:[#allocation8 + $0x48] sm:$0xff]
    %v707 = vld [vmem:[#allocation8 + $0x50] sm:$0xff]
    %v708 = vld [vmem:[#allocation8 + $0x58] sm:$0xff]
    %v709 = vld [vmem:[#allocation8 + $0x60] sm:$0xff]
    %v710 = vld [vmem:[#allocation8 + $0x68] sm:$0xff]
    %v711 = vld [vmem:[#allocation8 + $0x70] sm:$0xff]
    %v712 = vld [vmem:[#allocation8 + $0x78] sm:$0xff]
    %v713 = vld [vmem:[%s6] sm:$0x1]
    %714 = vmatprep.subr.mxu0 0.0
    %715 = vmatpush1.msra.mxu0 %v697
    %716 = vmatprep.subr.mxu0 0.0
    %717 = vmatpush1.msra.mxu0 %v698
    %718 = vmatprep.subr.mxu0 0.0
    %719 = vmatpush1.msra.mxu0 %v699
    %720 = vmatprep.subr.mxu0 0.0
    %721 = vmatpush1.msra.mxu0 %v700
    %722 = vmatprep.subr.mxu0 0.0
    %723 = vmatpush1.msra.mxu0 0.0
    %724 = vmatprep.subr.mxu0 0.0
    %725 = vmatpush1.msra.mxu0 0.0
    %726 = vmatprep.subr.mxu0 0.0
    %727 = vmatpush1.msra.mxu0 0.0
    %728 = vmatprep.subr.mxu0 0.0
    %729 = vmatpush1.msra.mxu0 0.0
    %730 = vmatprep.subr.mxu0 0.0
    %731 = vmatpush1.msra.mxu0 0.0
    %732 = vmatprep.subr.mxu0 0.0
    %733 = vmatpush1.msra.mxu0 0.0
    %734 = vmatprep.subr.mxu0 0.0
    %735 = vmatpush1.msra.mxu0 0.0
    %736 = vmatprep.subr.mxu0 0.0
    %737 = vmatpush1.msra.mxu0 0.0
    %738 = vmatprep.subr.mxu0 0.0
    %739 = vmatpush1.msra.mxu0 0.0
    %740 = vmatprep.subr.mxu0 0.0
    %741 = vmatpush1.msra.mxu0 0.0
    %742 = vmatprep.subr.mxu0 0.0
    %743 = vmatpush1.msra.mxu0 0.0
    %744 = vmatprep.subr.mxu0 0.0
    %745 = vmatpush1.msra.mxu0 0.0
    %746 = vmatprep.subr.mxu0 0.0
    %747 = vmatpush1.msra.mxu0 0.0
    %748 = vmatprep.subr.mxu0 0.0
    %749 = vmatpush1.msra.mxu0 0.0
    %750 = vmatprep.subr.mxu0 0.0
    %751 = vmatpush1.msra.mxu0 0.0
    %752 = vmatprep.subr.mxu0 0.0
    %753 = vmatpush1.msra.mxu0 0.0
    %754 = vmatprep.subr.mxu0 0.0
    %755 = vmatpush1.msra.mxu0 0.0
    %756 = vmatprep.subr.mxu0 0.0
    %757 = vmatpush1.msra.mxu0 0.0
    %758 = vmatprep.subr.mxu0 0.0
    %759 = vmatpush1.msra.mxu0 0.0
    %760 = vmatprep.subr.mxu0 0.0
    %761 = vmatpush1.msra.mxu0 0.0
    %762 = vmatprep.subr.mxu0 0.0
    %763 = vmatpush1.msra.mxu0 0.0
    %764 = vmatprep.subr.mxu0 0.0
    %765 = vmatpush1.msra.mxu0 0.0
    %766 = vmatprep.subr.mxu0 0.0
    %767 = vmatpush1.msra.mxu0 0.0
    %768 = vmatprep.subr.mxu0 0.0
    %769 = vmatpush1.msra.mxu0 0.0
    %770 = vmatprep.subr.mxu0 0.0
    %771 = vmatpush1.msra.mxu0 0.0
    %772 = vmatprep.subr.mxu0 0.0
    %773 = vmatpush1.msra.mxu0 0.0
    %774 = vmatprep.subr.mxu0 0.0
    %775 = vmatpush1.msra.mxu0 0.0
    %776 = vmatprep.subr.mxu0 0.0
    %777 = vmatpush1.msra.mxu0 0.0
    %778 = vmatprep.mubr.f32.mxu0 0.0
    %779 = vmatmul.mubr.f32.gmra.mrb[0].mxu0 %v97
    %v780 = vpop.f32.mrb[0].mxu0
    %v781 = vadd.f32 0.0, %v780
    %v782 = vpop.f32.mrb[0].mxu0
    %783 = vmatprep.mubr.f32.mxu0 0.0
    %784 = vmatmul.mubr.f32.gmra.mrb[0].mxu0 %v100
    %v785 = vpop.f32.mrb[0].mxu0
    %v786 = vadd.f32 0.0, %v785
    %v787 = vpop.f32.mrb[0].mxu0
    %788 = vmatprep.mubr.f32.mxu0 0.0
    %789 = vmatmul.mubr.f32.gmra.mrb[0].mxu0 %v103
    %v790 = vpop.f32.mrb[0].mxu0
    %v791 = vadd.f32 0.0, %v790
    %v792 = vpop.f32.mrb[0].mxu0
    %793 = vmatprep.mubr.f32.mxu0 0.0
    %794 = vmatmul.mubr.f32.gmra.mrb[0].mxu0 %v106
    %v795 = vpop.f32.mrb[0].mxu0
    %v796 = vadd.f32 0.0, %v795
    %v797 = vpop.f32.mrb[0].mxu0
    %798 = vdwg.mxu0
    %799 = vmatprep.subr.mxu0 0.0
    %800 = vmatpush1.msra.mxu0 %v701
    %801 = vmatprep.subr.mxu0 0.0
    %802 = vmatpush1.msra.mxu0 %v702
    %803 = vmatprep.subr.mxu0 0.0
    %804 = vmatpush1.msra.mxu0 %v703
    %805 = vmatprep.subr.mxu0 0.0
    %806 = vmatpush1.msra.mxu0 %v704
    %807 = vmatprep.subr.mxu0 0.0
    %808 = vmatpush1.msra.mxu0 0.0
    %809 = vmatprep.subr.mxu0 0.0
    %810 = vmatpush1.msra.mxu0 0.0
    %811 = vmatprep.subr.mxu0 0.0
    %812 = vmatpush1.msra.mxu0 0.0
    %813 = vmatprep.subr.mxu0 0.0
    %814 = vmatpush1.msra.mxu0 0.0
    %815 = vmatprep.subr.mxu0 0.0
    %816 = vmatpush1.msra.mxu0 0.0
    %817 = vmatprep.subr.mxu0 0.0
    %818 = vmatpush1.msra.mxu0 0.0
    %819 = vmatprep.subr.mxu0 0.0
    %820 = vmatpush1.msra.mxu0 0.0
    %821 = vmatprep.subr.mxu0 0.0
    %822 = vmatpush1.msra.mxu0 0.0
    %823 = vmatprep.subr.mxu0 0.0
    %824 = vmatpush1.msra.mxu0 0.0
    %825 = vmatprep.subr.mxu0 0.0
    %826 = vmatpush1.msra.mxu0 0.0
    %827 = vmatprep.subr.mxu0 0.0
    %828 = vmatpush1.msra.mxu0 0.0
    %829 = vmatprep.subr.mxu0 0.0
    %830 = vmatpush1.msra.mxu0 0.0
    %831 = vmatprep.subr.mxu0 0.0
    %832 = vmatpush1.msra.mxu0 0.0
    %833 = vmatprep.subr.mxu0 0.0
    %834 = vmatpush1.msra.mxu0 0.0
    %835 = vmatprep.subr.mxu0 0.0
    %836 = vmatpush1.msra.mxu0 0.0
    %837 = vmatprep.subr.mxu0 0.0
    %838 = vmatpush1.msra.mxu0 0.0
    %839 = vmatprep.subr.mxu0 0.0
    %840 = vmatpush1.msra.mxu0 0.0
    %841 = vmatprep.subr.mxu0 0.0
    %842 = vmatpush1.msra.mxu0 0.0
    %843 = vmatprep.subr.mxu0 0.0
    %844 = vmatpush1.msra.mxu0 0.0
    %845 = vmatprep.subr.mxu0 0.0
    %846 = vmatpush1.msra.mxu0 0.0
    %847 = vmatprep.subr.mxu0 0.0
    %848 = vmatpush1.msra.mxu0 0.0
    %849 = vmatprep.subr.mxu0 0.0
    %850 = vmatpush1.msra.mxu0 0.0
    %851 = vmatprep.subr.mxu0 0.0
    %852 = vmatpush1.msra.mxu0 0.0
    %853 = vmatprep.subr.mxu0 0.0
    %854 = vmatpush1.msra.mxu0 0.0
    %855 = vmatprep.subr.mxu0 0.0
    %856 = vmatpush1.msra.mxu0 0.0
    %857 = vmatprep.subr.mxu0 0.0
    %858 = vmatpush1.msra.mxu0 0.0
    %859 = vmatprep.subr.mxu0 0.0
    %860 = vmatpush1.msra.mxu0 0.0
    %861 = vmatprep.subr.mxu0 0.0
    %862 = vmatpush1.msra.mxu0 0.0
    %863 = vmatprep.mubr.f32.mxu0 0.0
    %864 = vmatmul.mubr.f32.gmra.mrb[0].mxu0 %v97
    %v865 = vpop.f32.mrb[0].mxu0
    %v866 = vadd.f32 0.0, %v865
    %v867 = vpop.f32.mrb[0].mxu0
    %868 = vmatprep.mubr.f32.mxu0 0.0
    %869 = vmatmul.mubr.f32.gmra.mrb[0].mxu0 %v100
    %v870 = vpop.f32.mrb[0].mxu0
    %v871 = vadd.f32 0.0, %v870
    %v872 = vpop.f32.mrb[0].mxu0
    %873 = vmatprep.mubr.f32.mxu0 0.0
    %874 = vmatmul.mubr.f32.gmra.mrb[0].mxu0 %v103
    %v875 = vpop.f32.mrb[0].mxu0
    %v876 = vadd.f32 0.0, %v875
    %v877 = vpop.f32.mrb[0].mxu0
    %878 = vmatprep.mubr.f32.mxu0 0.0
    %879 = vmatmul.mubr.f32.gmra.mrb[0].mxu0 %v106
    %v880 = vpop.f32.mrb[0].mxu0
    %v881 = vadd.f32 0.0, %v880
    %v882 = vpop.f32.mrb[0].mxu0
    %883 = vdwg.mxu0
    %884 = vmatprep.subr.mxu0 0.0
    %885 = vmatpush1.msra.mxu0 %v705
    %886 = vmatprep.subr.mxu0 0.0
    %887 = vmatpush1.msra.mxu0 %v706
    %888 = vmatprep.subr.mxu0 0.0
    %889 = vmatpush1.msra.mxu0 %v707
    %890 = vmatprep.subr.mxu0 0.0
    %891 = vmatpush1.msra.mxu0 %v708
    %892 = vmatprep.subr.mxu0 0.0
    %893 = vmatpush1.msra.mxu0 0.0
    %894 = vmatprep.subr.mxu0 0.0
    %895 = vmatpush1.msra.mxu0 0.0
    %896 = vmatprep.subr.mxu0 0.0
    %897 = vmatpush1.msra.mxu0 0.0
    %898 = vmatprep.subr.mxu0 0.0
    %899 = vmatpush1.msra.mxu0 0.0
    %900 = vmatprep.subr.mxu0 0.0
    %901 = vmatpush1.msra.mxu0 0.0
    %902 = vmatprep.subr.mxu0 0.0
    %903 = vmatpush1.msra.mxu0 0.0
    %904 = vmatprep.subr.mxu0 0.0
    %905 = vmatpush1.msra.mxu0 0.0
    %906 = vmatprep.subr.mxu0 0.0
    %907 = vmatpush1.msra.mxu0 0.0
    %908 = vmatprep.subr.mxu0 0.0
    %909 = vmatpush1.msra.mxu0 0.0
    %910 = vmatprep.subr.mxu0 0.0
    %911 = vmatpush1.msra.mxu0 0.0
    %912 = vmatprep.subr.mxu0 0.0
    %913 = vmatpush1.msra.mxu0 0.0
    %914 = vmatprep.subr.mxu0 0.0
    %915 = vmatpush1.msra.mxu0 0.0
    %916 = vmatprep.subr.mxu0 0.0
    %917 = vmatpush1.msra.mxu0 0.0
    %918 = vmatprep.subr.mxu0 0.0
    %919 = vmatpush1.msra.mxu0 0.0
    %920 = vmatprep.subr.mxu0 0.0
    %921 = vmatpush1.msra.mxu0 0.0
    %922 = vmatprep.subr.mxu0 0.0
    %923 = vmatpush1.msra.mxu0 0.0
    %924 = vmatprep.subr.mxu0 0.0
    %925 = vmatpush1.msra.mxu0 0.0
    %926 = vmatprep.subr.mxu0 0.0
    %927 = vmatpush1.msra.mxu0 0.0
    %928 = vmatprep.subr.mxu0 0.0
    %929 = vmatpush1.msra.mxu0 0.0
    %930 = vmatprep.subr.mxu0 0.0
    %931 = vmatpush1.msra.mxu0 0.0
    %932 = vmatprep.subr.mxu0 0.0
    %933 = vmatpush1.msra.mxu0 0.0
    %934 = vmatprep.subr.mxu0 0.0
    %935 = vmatpush1.msra.mxu0 0.0
    %936 = vmatprep.subr.mxu0 0.0
    %937 = vmatpush1.msra.mxu0 0.0
    %938 = vmatprep.subr.mxu0 0.0
    %939 = vmatpush1.msra.mxu0 0.0
    %940 = vmatprep.subr.mxu0 0.0
    %941 = vmatpush1.msra.mxu0 0.0
    %942 = vmatprep.subr.mxu0 0.0
    %943 = vmatpush1.msra.mxu0 0.0
    %944 = vmatprep.subr.mxu0 0.0
    %945 = vmatpush1.msra.mxu0 0.0
    %946 = vmatprep.subr.mxu0 0.0
    %947 = vmatpush1.msra.mxu0 0.0
    %948 = vmatprep.mubr.f32.mxu0 0.0
    %949 = vmatmul.mubr.f32.gmra.mrb[0].mxu0 %v97
    %v950 = vpop.f32.mrb[0].mxu0
    %v951 = vadd.f32 0.0, %v950
    %v952 = vpop.f32.mrb[0].mxu0
    %953 = vmatprep.mubr.f32.mxu0 0.0
    %954 = vmatmul.mubr.f32.gmra.mrb[0].mxu0 %v100
    %v955 = vpop.f32.mrb[0].mxu0
    %v956 = vadd.f32 0.0, %v955
    %v957 = vpop.f32.mrb[0].mxu0
    %958 = vmatprep.mubr.f32.mxu0 0.0
    %959 = vmatmul.mubr.f32.gmra.mrb[0].mxu0 %v103
    %v960 = vpop.f32.mrb[0].mxu0
    %v961 = vadd.f32 0.0, %v960
    %v962 = vpop.f32.mrb[0].mxu0
    %963 = vmatprep.mubr.f32.mxu0 0.0
    %964 = vmatmul.mubr.f32.gmra.mrb[0].mxu0 %v106
    %v965 = vpop.f32.mrb[0].mxu0
    %v966 = vadd.f32 0.0, %v965
    %v967 = vpop.f32.mrb[0].mxu0
    %968 = vdwg.mxu0
    %969 = vmatprep.subr.mxu0 0.0
    %970 = vmatpush1.msra.mxu0 %v709
    %971 = vmatprep.subr.mxu0 0.0
    %972 = vmatpush1.msra.mxu0 %v710
    %973 = vmatprep.subr.mxu0 0.0
    %974 = vmatpush1.msra.mxu0 %v711
    %975 = vmatprep.subr.mxu0 0.0
    %976 = vmatpush1.msra.mxu0 %v712
    %977 = vmatprep.subr.mxu0 0.0
    %978 = vmatpush1.msra.mxu0 0.0
    %979 = vmatprep.subr.mxu0 0.0
    %980 = vmatpush1.msra.mxu0 0.0
    %981 = vmatprep.subr.mxu0 0.0
    %982 = vmatpush1.msra.mxu0 0.0
    %983 = vmatprep.subr.mxu0 0.0
    %984 = vmatpush1.msra.mxu0 0.0
    %985 = vmatprep.subr.mxu0 0.0
    %986 = vmatpush1.msra.mxu0 0.0
    %987 = vmatprep.subr.mxu0 0.0
    %988 = vmatpush1.msra.mxu0 0.0
    %989 = vmatprep.subr.mxu0 0.0
    %990 = vmatpush1.msra.mxu0 0.0
    %991 = vmatprep.subr.mxu0 0.0
    %992 = vmatpush1.msra.mxu0 0.0
    %993 = vmatprep.subr.mxu0 0.0
    %994 = vmatpush1.msra.mxu0 0.0
    %995 = vmatprep.subr.mxu0 0.0
    %996 = vmatpush1.msra.mxu0 0.0
    %997 = vmatprep.subr.mxu0 0.0
    %998 = vmatpush1.msra.mxu0 0.0
    %999 = vmatprep.subr.mxu0 0.0
    %1000 = vmatpush1.msra.mxu0 0.0
    %1001 = vmatprep.subr.mxu0 0.0
    %1002 = vmatpush1.msra.mxu0 0.0
    %1003 = vmatprep.subr.mxu0 0.0
    %1004 = vmatpush1.msra.mxu0 0.0
    %1005 = vmatprep.subr.mxu0 0.0
    %1006 = vmatpush1.msra.mxu0 0.0
    %1007 = vmatprep.subr.mxu0 0.0
    %1008 = vmatpush1.msra.mxu0 0.0
    %1009 = vmatprep.subr.mxu0 0.0
    %1010 = vmatpush1.msra.mxu0 0.0
    %1011 = vmatprep.subr.mxu0 0.0
    %1012 = vmatpush1.msra.mxu0 0.0
    %1013 = vmatprep.subr.mxu0 0.0
    %1014 = vmatpush1.msra.mxu0 0.0
    %1015 = vmatprep.subr.mxu0 0.0
    %1016 = vmatpush1.msra.mxu0 0.0
    %1017 = vmatprep.subr.mxu0 0.0
    %1018 = vmatpush1.msra.mxu0 0.0
    %1019 = vmatprep.subr.mxu0 0.0
    %1020 = vmatpush1.msra.mxu0 0.0
    %1021 = vmatprep.subr.mxu0 0.0
    %1022 = vmatpush1.msra.mxu0 0.0
    %1023 = vmatprep.subr.mxu0 0.0
    %1024 = vmatpush1.msra.mxu0 0.0
    %1025 = vmatprep.subr.mxu0 0.0
    %1026 = vmatpush1.msra.mxu0 0.0
    %1027 = vmatprep.subr.mxu0 0.0
    %1028 = vmatpush1.msra.mxu0 0.0
    %1029 = vmatprep.subr.mxu0 0.0
    %1030 = vmatpush1.msra.mxu0 0.0
    %1031 = vmatprep.subr.mxu0 0.0
    %1032 = vmatpush1.msra.mxu0 0.0
    %1033 = vmatprep.mubr.f32.mxu0 0.0
    %1034 = vmatmul.mubr.f32.gmra.mrb[0].mxu0 %v97
    %v1035 = vpop.f32.mrb[0].mxu0
    %v1036 = vadd.f32 0.0, %v1035
    %v1037 = vpop.f32.mrb[0].mxu0
    %1038 = vmatprep.mubr.f32.mxu0 0.0
    %1039 = vmatmul.mubr.f32.gmra.mrb[0].mxu0 %v100
    %v1040 = vpop.f32.mrb[0].mxu0
    %v1041 = vadd.f32 0.0, %v1040
    %v1042 = vpop.f32.mrb[0].mxu0
    %1043 = vmatprep.mubr.f32.mxu0 0.0
    %1044 = vmatmul.mubr.f32.gmra.mrb[0].mxu0 %v103
    %v1045 = vpop.f32.mrb[0].mxu0
    %v1046 = vadd.f32 0.0, %v1045
    %v1047 = vpop.f32.mrb[0].mxu0
    %1048 = vmatprep.mubr.f32.mxu0 0.0
    %1049 = vmatmul.mubr.f32.gmra.mrb[0].mxu0 %v106
    %v1050 = vpop.f32.mrb[0].mxu0
    %v1051 = vadd.f32 0.0, %v1050
    %v1052 = vpop.f32.mrb[0].mxu0
    %1053 = vdwg.mxu0
    %v1056 = vrot.slane %v866, 1
    %v1057 = vrot.slane %v871, 1
    %v1058 = vsel %vm280, %v1056, %v1057
    %v1061 = vadd.f32 %v781, %v1058
    %v1062 = vadd.f32 %v786, %v1057
    %v1065 = vrot.slane %v951, 2
    %v1066 = vrot.slane %v956, 2
    %v1067 = vsel %vm613, %v1065, %v1066
    %v1070 = vadd.f32 %v1061, %v1067
    %v1071 = vadd.f32 %v1062, %v1066
    %vm1074 = vcmask 1044480
    %v1075 = vrot.slane %v1036, 3
    %v1076 = vrot.slane %v1041, 3
    %v1077 = vsel %vm1074, %v1075, %v1076
    %v1080 = vadd.f32 %v1070, %v1077
    %v1081 = vadd.f32 %v1071, %v1076
    %v1083 = vlaneseq
    %v1084 = vshrl.u32 %v1083, 7
    %v1085 = vsub.s32 0, %v1084
    %v1086 = vrot.slane %v713, %v1085
    %v1088 = vadd.f32 %v1080, %v1086
    %v1089 = vadd.f32 %v1081, %v1086
    %v1090 = vmax.f32 %v1088, 0.0
    %v1091 = vmax.f32 %v1089, 0.0
    %v1092 = vsel %vm298, %v1090, -inf
    %vm1093 = vcmask 520192
    %v1094 = vsel %vm1093, %v1091, -inf
    %v1095 = vmax.f32 %v1092, %v1094
    %v1096 = vrot.slane %v1095, 4
    %v1097 = vmax.f32 %v1095, %v1096
    %v1098 = vrot.slane %v1097, 2
    %v1099 = vmax.f32 %v1097, %v1098
    %v1100 = vrot.slane %v1099, 1
    %v1101 = vmax.f32 %v1099, %v1100
    %1102 = vst.msk [vmem:[#allocation10 + $0x2] sm:$0x1] %vm309, %v1101
    %v1105 = vrot.slane %v876, 1
    %v1106 = vrot.slane %v881, 1
    %v1107 = vsel %vm280, %v1105, %v1106
    %v1110 = vadd.f32 %v791, %v1107
    %v1111 = vadd.f32 %v796, %v1106
    %v1114 = vrot.slane %v961, 2
    %v1115 = vrot.slane %v966, 2
    %v1116 = vsel %vm613, %v1114, %v1115
    %v1119 = vadd.f32 %v1110, %v1116
    %v1120 = vadd.f32 %v1111, %v1115
    %v1123 = vrot.slane %v1046, 3
    %v1124 = vrot.slane %v1051, 3
    %v1125 = vsel %vm1074, %v1123, %v1124
    %v1128 = vadd.f32 %v1119, %v1125
    %v1129 = vadd.f32 %v1120, %v1124
    %v1130 = vadd.f32 %v1128, %v1086
    %v1131 = vadd.f32 %v1129, %v1086
    %v1132 = vmax.f32 %v1130, 0.0
    %v1133 = vmax.f32 %v1131, 0.0
    %v1134 = vsel %vm298, %v1132, -inf
    %v1135 = vsel %vm1093, %v1133, -inf
    %v1136 = vmax.f32 %v1134, %v1135
    %v1137 = vrot.slane %v1136, 4
    %v1138 = vmax.f32 %v1136, %v1137
    %v1139 = vrot.slane %v1138, 2
    %v1140 = vmax.f32 %v1138, %v1139
    %v1141 = vrot.slane %v1140, 1
    %v1142 = vmax.f32 %v1140, %v1141
    %1143 = vst.msk [vmem:[#allocation10 + $0x3] sm:$0x1] %vm309, %v1142
    // Predicated region
    $region46: #{tpu_custom_call.1} parent=1 // pred_check
      _
    $region47: #{tpu_custom_call.1} parent=1 // pred_check_branch
      %1145 = sbr.rel (0) target = $region49
    $region48: #{tpu_custom_call.1} parent=1 // pred_region
      %s1147 = ssub.s32 64, 64
      %1148 = vsyncadd [#allocation4], %s1147
      %s1150 = sshll.u32 [#allocation10], 4
      %s1151 = int_to_ptr.vmem [resolvable:$true] %s1150
      %1153 = dma.vmem_to_hbm [thread:$0]  %s1151, 64, %s7, [#allocation4]
    $region49: #{tpu_custom_call.1} parent=1 // pred_fallthru
      _
    // Predicated region
    $region50: #{tpu_custom_call.1} parent=1 // pred_check
      _
    $region51: #{tpu_custom_call.1} parent=1 // pred_check_branch
      %1155 = sbr.rel (0) target = $region53
    $region52: #{tpu_custom_call.1} parent=1 // pred_region
      %1156 = dma.done [#allocation4], 64
    $region53: #{tpu_custom_call.1} parent=1 // pred_fallthru
      _
    %1157 = vsyncpa [#allocation3], 1
    %1158 = vsyncpa [#allocation6], 1
    %1159 = vsyncpa [#allocation9], 1
    %1160 = vsyncpa [#allocation4], 1

</llo_original>
